<compile_context>
chip_gen: v7x
topology: tpu7x:2x2x1
jax: 0.10.0
libtpu: 0.0.40
codegen_flags: <defaults>
</compile_context>

<pallas_src>
import jax
import jax.numpy as jnp
from jax.experimental import pallas as pl
from jax.experimental.pallas import tpu as pltpu


def _word_dropout_kernel(mask_ref, x_ref, o_ref):
    # mask_ref: (bB, 1) block of per-row keep values (0.0 / 1.0), x.dtype.
    # x_ref / o_ref: (bB, tN) blocks. Broadcast-multiply over the lane dim.
    o_ref[...] = x_ref[...] * mask_ref[...]


def _vmem_budget():
    """Per-generation (vmem_limit_bytes, block_target_bytes)."""
    try:
        cap = int(pltpu.get_tpu_info().vmem_capacity_bytes)
    except Exception:
        cap = 64 * 1024 * 1024  # conservative: assume v7x-sized VMEM
    # Leave ~25% headroom; never ask for more than 96 MiB scoped VMEM.
    limit = min((cap * 3) // 4, 96 * 1024 * 1024)
    # Double-buffered in + out = 4x block_bytes (+ tiny mask) must fit `limit`.
    target = min(8 * 1024 * 1024, max(2 * 1024 * 1024, limit // 5))
    return limit, target


def _pick_tiles(B, N, itemsize, target_bytes):
    """Choose a (bB, tN) block of roughly `target_bytes`, layout-legal on TPU."""
    LANE, SUB = 128, 8
    MAX_ROWS = 512  # keep the lane-padded (bB, 1) mask block tiny in VMEM

    bB = B if B <= SUB else SUB

    if N <= LANE:
        tN = N  # lane dim equals the full array dim -> legal as-is
    else:
        n_pad = pl.cdiv(N, LANE) * LANE
        max_tn = max(LANE, (target_bytes // (bB * itemsize)) // LANE * LANE)
        tN = min(n_pad, max_tn)

    # If rows are short but the batch is large, pack more rows per block —
    # but never above round_up(B, 8) (no pointless padding) nor MAX_ROWS
    # (mask lane-padding cost).
    if B > SUB:
        per_row_bytes = max(tN * itemsize, 1)
        want_rows = max(SUB, (target_bytes // per_row_bytes) // SUB * SUB)
        b_pad = pl.cdiv(B, SUB) * SUB
        bB = min(b_pad, want_rows, MAX_ROWS)
    return bB, tN


def word_dropout(x, seed: int, dropout_rate: float = 0.1, training: bool = True,
                 donate_input: bool = False):
    """Pallas implementation of WordDropout.forward (no 1/(1-p) rescale)."""
    assert 0.0 <= dropout_rate < 1.0, "0.0 <= dropout rate < 1.0 must be satisfied!"
    if not training or dropout_rate == 0.0:
        return x

    B = x.shape[0]
    x2 = x.reshape(B, -1)          # lane-dense last dim for the kernel
    N = x2.shape[1]
    itemsize = jnp.dtype(x.dtype).itemsize

    # Per-dim-0 Bernoulli(1 - p) keep mask, drawn with jax.random in the
    # wrapper (statistically sound; keeps the kernel a plain multiply and
    # avoids in-kernel PRNG lowering issues).
    key = jax.random.PRNGKey(seed)
    keep = jax.random.bernoulli(key, p=1.0 - dropout_rate, shape=(B, 1))
    keep = keep.astype(x.dtype)

    vmem_limit, target_bytes = _vmem_budget()
    bB, tN = _pick_tiles(B, N, itemsize, target_bytes)
    gB = pl.cdiv(B, bB)
    gN = pl.cdiv(N, tN)

    # Order the grid so the leading parallel axis has the larger extent —
    # guarantees both v7x TensorCores get blocks even when batch is tiny.
    if gN >= gB:
        grid = (gN, gB)
        mask_spec = pl.BlockSpec((bB, 1), lambda j, i: (i, 0))
        x_spec = pl.BlockSpec((bB, tN), lambda j, i: (i, j))
        out_spec = pl.BlockSpec((bB, tN), lambda j, i: (i, j))
    else:
        grid = (gB, gN)
        mask_spec = pl.BlockSpec((bB, 1), lambda i, j: (i, 0))
        x_spec = pl.BlockSpec((bB, tN), lambda i, j: (i, j))
        out_spec = pl.BlockSpec((bB, tN), lambda i, j: (i, j))

    cost = pl.CostEstimate(
        flops=B * N,
        transcendentals=0,
        bytes_accessed=2 * B * N * itemsize + B * itemsize,
    )

    kwargs = {}
    if donate_input:
        # Reuse x2's HBM buffer for the output when the caller won't reuse
        # the pre-dropout activations.
        kwargs["input_output_aliases"] = {1: 0}

    out2 = pl.pallas_call(
        _word_dropout_kernel,
        out_shape=jax.ShapeDtypeStruct((B, N), x.dtype),
        grid=grid,
        in_specs=[mask_spec, x_spec],
        out_specs=out_spec,
        compiler_params=pltpu.CompilerParams(
            dimension_semantics=("parallel", "parallel"),
            vmem_limit_bytes=int(vmem_limit),
        ),
        cost_estimate=cost,
        **kwargs,
    )(keep, x2)

    return out2.reshape(x.shape)


if __name__ == "__main__":
    key = jax.random.PRNGKey(0)
    B, S, H = 2, 8, 32
    x = jax.random.normal(key, (B, S, H), dtype=jnp.float32)

    out = jax.block_until_ready(
        word_dropout(x, seed=1234, dropout_rate=0.1, training=True)
    )

    x_np = jax.device_get(x)
    o_np = jax.device_get(out)

    # Each batch row must be either an exact copy of the input row or all
    # zeros (word-level mask, no rescaling).
    for b in range(B):
        same = bool((o_np[b] == x_np[b]).all())
        zero = bool((o_np[b] == 0.0).all())
        assert same or zero, f"row {b}: not a word-level dropout result"

    # Exact cross-check against a pure-JAX reference with the identical mask.
    keep_ref = jax.random.bernoulli(
        jax.random.PRNGKey(1234), p=1.0 - 0.1, shape=(B, 1)
    ).astype(x.dtype)
    ref = x_np * jax.device_get(keep_ref)[:, :, None]
    assert bool((o_np == ref).all()), "kernel output != reference mask multiply"

    # Eval mode passes the input through untouched.
    out_eval = jax.block_until_ready(
        word_dropout(x, seed=1234, dropout_rate=0.1, training=False)
    )
    assert bool((jax.device_get(out_eval) == x_np).all())

    # Odd, non-aligned shape to exercise small / partial blocks.
    x_odd = jax.random.normal(jax.random.PRNGKey(2), (3, 5, 7), dtype=jnp.float32)
    o_odd = jax.device_get(
        jax.block_until_ready(word_dropout(x_odd, seed=7, dropout_rate=0.5))
    )
    x_odd_np = jax.device_get(x_odd)
    for b in range(3):
        assert bool((o_odd[b] == x_odd_np[b]).all()) or bool((o_odd[b] == 0.0).all())

    # Larger, lane-dense batch exercises the multi-row / large-tile path and
    # the grid-reordering branch.
    x_big = jax.random.normal(jax.random.PRNGKey(3), (24, 16, 64), dtype=jnp.float32)
    o_big = jax.device_get(
        jax.block_until_ready(word_dropout(x_big, seed=99, dropout_rate=0.3))
    )
    x_big_np = jax.device_get(x_big)
    for b in range(24):
        assert bool((o_big[b] == x_big_np[b]).all()) or bool((o_big[b] == 0.0).all())

    print("KERNEL_OK")
</pallas_src>

<mosaic_0001>
module attributes {stable_mosaic.version = 11 : i64} {
  func.func @_word_dropout_kernel(%arg0: i32, %arg1: i32, %arg2: memref<2x1xf32, #tpu.memory_space<vmem>>, %arg3: memref<2x256xf32, #tpu.memory_space<vmem>>, %arg4: memref<2x256xf32, #tpu.memory_space<vmem>>) attributes {dimension_semantics = [#tpu.dimension_semantics<parallel>, #tpu.dimension_semantics<parallel>], iteration_bounds = array<i64: 1, 1>, scalar_prefetch = 0 : i64, scratch_operands = 0 : i64, tpu.core_type = #tpu.core_type<tc>, window_params = [{transform_indices = @transform_0, window_bounds = array<i64: 2, 1>}, {transform_indices = @transform_1, window_bounds = array<i64: 2, 256>}, {transform_indices = @transform_2, window_bounds = array<i64: 2, 256>}]} {
    %c0 = arith.constant 0 : index
    %c0_0 = arith.constant 0 : index
    %0 = vector.load %arg3[%c0, %c0_0] : memref<2x256xf32, #tpu.memory_space<vmem>>, vector<2x256xf32>
    %c0_1 = arith.constant 0 : index
    %c0_2 = arith.constant 0 : index
    %1 = vector.load %arg2[%c0_1, %c0_2] : memref<2x1xf32, #tpu.memory_space<vmem>>, vector<2x1xf32>
    %2 = vector.broadcast %1 : vector<2x1xf32> to vector<2x256xf32>
    %3 = arith.mulf %0, %2 : vector<2x256xf32>
    %c0_3 = arith.constant 0 : index
    %c0_4 = arith.constant 0 : index
    %4 = vector.load %arg4[%c0_3, %c0_4] : memref<2x256xf32, #tpu.memory_space<vmem>>, vector<2x256xf32>
    tpu.vector_store %arg4[%c0_3, %c0_4], %3 {strides = array<i32>} : memref<2x256xf32, #tpu.memory_space<vmem>>, vector<2x256xf32>,
    return
  }
  func.func @transform_0(%arg0: i32, %arg1: i32) -> (i32, i32) {
    %c0_i32 = arith.constant 0 : i32
    %c0_i32_0 = arith.constant 0 : i32
    return %arg1, %c0_i32 : i32, i32
  }
  func.func @transform_1(%arg0: i32, %arg1: i32) -> (i32, i32) {
    %c0_i32 = arith.constant 0 : i32
    return %arg1, %arg0 : i32, i32
  }
  func.func @transform_2(%arg0: i32, %arg1: i32) -> (i32, i32) {
    %c0_i32 = arith.constant 0 : i32
    return %arg1, %arg0 : i32, i32
  }
}

</mosaic_0001>

<llo_original>
// kernel: tpu_custom_call.1
$region0: #{tpu_custom_call.1}
  #allocation0 [shape = 'u32[]', space=smem, size = 0x4, offset = 0x4, fixed_abs, tag = 'smem constant byte address 0x4 - core index']
  #allocation1 [shape = 'u32[144,128]{1,0:T(1,128)}', space=vmem, size = 0x12000, scoped, tag = 'internal scratch']
  %s0 = inlined_call_operand.vmem [shape: f32[2,1], index: 0, kind: input, shape index: {}]
  %s1 = inlined_call_operand.vmem [shape: f32[2,256], index: 1, kind: input, shape index: {}]
  %s2 = inlined_call_operand.hbm [shape: f32[2,256], index: 2, kind: output, shape index: {}]
  %s3 = sld [smem:[#allocation0]]
  $region18: #{tpu_custom_call.1} parent=0
    _
  %s5 = ssub.s32 1, %s3
  %s6 = scalar_select 0, %s5, %s3
  $region1: #{tpu_custom_call.1} parent=0
    #allocation2 [shape = 'u8[2048]{0}', space=vmem, size = 0x800, scoped, tag = 'output window, operand 0, single buffered']
    #allocation3 [shape = 's32[1]{0}', space=sflag, size = 0x4, scoped, tag = 'scoped memory for tpu_custom_call.1']
    %7 = vsyncpa [#allocation3], 0
    // Predicated region
    $region2: #{tpu_custom_call.1} parent=1 // pred_check
      _
    $region3: #{tpu_custom_call.1} parent=1 // pred_check_branch
      %9 = sbr.rel (0) target = $region5
    $region4: #{tpu_custom_call.1} parent=1 // pred_region
      _
    $region5: #{tpu_custom_call.1} parent=1 // pred_fallthru
      _
    // Predicated region
    $region6: #{tpu_custom_call.1} parent=1 // pred_check
      _
    $region7: #{tpu_custom_call.1} parent=1 // pred_check_branch
      %11 = sbr.rel (0) target = $region9
    $region8: #{tpu_custom_call.1} parent=1 // pred_region
      _
    $region9: #{tpu_custom_call.1} parent=1 // pred_fallthru
      _
    %v12 = vld [vmem:[%s1] sm:$0xf]
    %v13 = vld [vmem:[%s0] sm:$0x3]
    %15 = vset.pattern.permute.xlu0 0
    %16 = vperm.xlu0 %15, %v13
    %v17 = vpop.permute.xlu0 %16
    %v19 = vunpack.c.l.s4 269488144
    %v20 = vunpack.c.0.s8 %v19
    %v21 = vlaneseq
    %v22 = vshrl.u32 %v21, 7
    %v23 = vsub.s32 %v20, %v22
    %v24 = vrot.slane %v17, %v23
    %v26 = vmul.f32 %v12, %v24
    %27 = vst [vmem:[#allocation2] sm:$0xf] %v26
    // Predicated region
    $region10: #{tpu_custom_call.1} parent=1 // pred_check
      _
    $region11: #{tpu_custom_call.1} parent=1 // pred_check_branch
      %29 = sbr.rel (0) target = $region13
    $region12: #{tpu_custom_call.1} parent=1 // pred_region
      %s31 = ssub.s32 64, 64
      %32 = vsyncadd [#allocation3], %s31
      %s34 = sshll.u32 [#allocation2], 4
      %s35 = int_to_ptr.vmem [resolvable:$true] %s34
      %37 = dma.vmem_to_hbm [thread:$0]  %s35, 64, %s2, [#allocation3]
    $region13: #{tpu_custom_call.1} parent=1 // pred_fallthru
      _
    // Predicated region
    $region14: #{tpu_custom_call.1} parent=1 // pred_check
      _
    $region15: #{tpu_custom_call.1} parent=1 // pred_check_branch
      %39 = sbr.rel (0) target = $region17
    $region16: #{tpu_custom_call.1} parent=1 // pred_region
      %40 = dma.done [#allocation3], 64
    $region17: #{tpu_custom_call.1} parent=1 // pred_fallthru
      _
    %41 = vsyncpa [#allocation3], 1

</llo_original>
